<compile_context>
chip_gen: v7x
topology: tpu7x:2x2x1
jax: 0.10.0
libtpu: 0.0.40
codegen_flags: <defaults>
</compile_context>

<pallas_src>
import functools

import jax
import jax.numpy as jnp
from jax import lax
from jax.experimental import pallas as pl
from jax.experimental.pallas import tpu as pltpu


_LANE = 128


# ------------------------------- Pallas kernel -------------------------------

def _gram_mse_kernel(f_ref, t_ref, out_ref, acc_ref, *, half_inv_L, L, tk,
                     needs_mask):
    """One (c, tk) tile of f and t for one batch element.

    acc_ref accumulates A = sum_tiles (F+T) @ (F-T)^T in f32.  On the last
    L-tile, D = (0.5/L) * (A + A^T) == gram(f) - gram(t) and sum(D^2) is
    written to this batch's (1, 1) output block.
    """
    ki = pl.program_id(1)
    nk = pl.num_programs(1)

    @pl.when(ki == 0)
    def _():
        acc_ref[...] = jnp.zeros_like(acc_ref)

    fb = f_ref[...]
    tb = t_ref[...]
    if needs_mask:
        # Zero the out-of-range lanes of the (possibly OOB-padded) tail tile;
        # zero columns contribute nothing to either Gram matrix.
        lane_idx = lax.broadcasted_iota(jnp.int32, fb.shape, 1)
        valid = (ki * tk + lane_idx) < L
        fb = jnp.where(valid, fb, jnp.zeros_like(fb))
        tb = jnp.where(valid, tb, jnp.zeros_like(tb))

    # Single MXU contraction per tile (native dtype in, f32 accumulation):
    #   (F + T)(F - T)^T contracted over the L tile  ->  (c, c)
    su = fb + tb
    sd = fb - tb
    dims = (((1,), (1,)), ((), ()))
    acc_ref[...] += lax.dot_general(su, sd, dims,
                                    preferred_element_type=jnp.float32)

    @pl.when(ki == nk - 1)
    def _():
        a = acc_ref[...]
        d = (a + a.T) * jnp.float32(half_inv_L)      # = gram(f) - gram(t)
        out_ref[...] = jnp.sum(d * d, keepdims=True)


# ------------------------------ tiling heuristics -----------------------------

def _vmem_capacity_bytes():
    try:
        return int(pltpu.get_tpu_info().vmem_capacity_bytes)
    except Exception:
        return 64 << 20   # conservative fallback: v7x per-TensorCore VMEM


def _pick_tiling(c, L, itemsize):
    """Choose (tk, needs_mask, buffer_count, vmem_capacity).

    tk is lane-aligned (multiple of 128) and sized so 2 inputs x buffer_count
    x (c, tk) tiles fit in ~45% of this chip's VMEM (dtype-aware)."""
    vmem_cap = _vmem_capacity_bytes()
    if L <= _LANE:
        return L, False, 2, vmem_cap           # full-extent block, no mask
    input_budget = int(vmem_cap * 0.45)
    per_tk_bytes = 2 * 2 * c * itemsize        # 2 inputs x 2 buffers x c rows
    tk = min(max(input_budget // per_tk_bytes, _LANE), 4096,
             (L // _LANE) * _LANE)
    tk = max(_LANE, (tk // _LANE) * _LANE)
    # Prefer an exact divisor of L (no tail mask / wasted tail DMA) when one
    # exists within 2x of the budgeted tile size.
    div = 0
    d = tk
    while d >= _LANE:
        if L % d == 0:
            div = d
            break
        d -= _LANE
    if div and div * 2 >= tk:
        tk = div
    needs_mask = (L % tk) != 0
    nk = pl.cdiv(L, tk)
    # Small tiles expose per-step DMA issue latency; a third buffer hides it.
    buffers = 2
    if tk <= 512 and nk >= 3 and 2 * 3 * c * tk * itemsize <= input_budget:
        buffers = 3
    return tk, needs_mask, buffers, vmem_cap


def _input_spec(c, tk, buffers):
    idx = lambda bi, ki: (bi, 0, ki)
    if buffers > 2:
        try:
            return pl.BlockSpec((None, c, tk), idx,
                                pipeline_mode=pl.Buffered(buffers))
        except TypeError:
            pass   # older jax without pipeline_mode: default double buffering
    return pl.BlockSpec((None, c, tk), idx)


# ------------------------------ per-pair wrappers ------------------------------

def _gram_mse_pair_pallas(f, t):
    """MSELoss(gram(f), gram(t)) for one NCHW pair via the Pallas kernel."""
    b, c, h, w = f.shape
    L = h * w
    fr = f.reshape(b, c, L)     # views only; no extra HBM copies
    tr = t.reshape(b, c, L)
    itemsize = jnp.dtype(f.dtype).itemsize
    tk, needs_mask, buffers, vmem_cap = _pick_tiling(c, L, itemsize)
    nk = pl.cdiv(L, tk)

    kernel = functools.partial(_gram_mse_kernel, half_inv_L=0.5 / float(L),
                               L=L, tk=tk, needs_mask=needs_mask)
    in_spec = _input_spec(c, tk, buffers)

    need = 2 * buffers * c * tk * itemsize + 4 * c * c + (4 << 20)
    vmem_limit = int(min(vmem_cap * 0.9, max(need, 32 << 20)))

    out = pl.pallas_call(
        kernel,
        out_shape=jax.ShapeDtypeStruct((b, 1, 1), jnp.float32),
        grid_spec=pltpu.PrefetchScalarGridSpec(
            num_scalar_prefetch=0,
            grid=(b, nk),
            in_specs=[in_spec, in_spec],
            out_specs=pl.BlockSpec((None, 1, 1), lambda bi, ki: (bi, 0, 0)),
            scratch_shapes=[pltpu.VMEM((c, c), jnp.float32)],
        ),
        compiler_params=pltpu.CompilerParams(
            dimension_semantics=("parallel", "arbitrary"),
            vmem_limit_bytes=vmem_limit),
    )(fr, tr)
    # MSE normalization (gram's 1/(h*w) is already applied inside the kernel).
    return jnp.sum(out[:, 0, 0]) * jnp.float32(1.0 / (b * c * c))


def _gram_f32(x):
    b, c, h, w = x.shape
    xr = x.reshape(b, c, h * w).astype(jnp.float32)
    return jnp.einsum('bil,bjl->bij', xr, xr) / (h * w)


def _gram_mse_pair_small(f, t):
    return jnp.mean((_gram_f32(f) - _gram_f32(t)) ** 2)


def _gram_mse_pair(f, t):
    assert f.shape == t.shape and f.ndim == 4
    _, c, h, w = f.shape
    if c < 8 or h * w < _LANE:
        # Tiny layers: pallas_call launch + per-step overhead would dominate;
        # let XLA fuse the plain einsum path instead.
        return _gram_mse_pair_small(f, t)
    return _gram_mse_pair_pallas(f, t)


def gram_loss(features, targets, weights=None):
    """Pallas equivalent of GramLoss.forward(features, targets, weights)."""
    if weights is None:
        weights = [1.0 / len(features)] * len(features)
    loss = jnp.float32(0.0)
    for f, t, w in zip(features, targets, weights):
        loss = loss + _gram_mse_pair(f, t) * jnp.asarray(w, dtype=jnp.float32)
    return loss


# ----------------------------- pure-JAX reference -----------------------------

def _gram_loss_ref(features, targets, weights=None):
    if weights is None:
        weights = [1.0 / len(features)] * len(features)
    loss = jnp.float32(0.0)
    for f, t, w in zip(features, targets, weights):
        loss = loss + _gram_mse_pair_small(f, t) * jnp.asarray(
            w, dtype=jnp.float32)
    return loss


if __name__ == "__main__":
    key = jax.random.PRNGKey(0)
    k1, k2, k3, k4, k5, k6 = jax.random.split(key, 6)
    # Three "layers" of features/targets (the module takes lists):
    #  - two tiny layers exercising the fused einsum fast path,
    #  - one layer (c=32, 24x24 -> L=576, not a multiple of 128) exercising the
    #    Pallas path incl. the masked tail tile and multi-tile reduction.
    features = [
        jax.random.normal(k1, (2, 4, 16, 16), dtype=jnp.float32),
        jax.random.normal(k2, (2, 8, 8, 8), dtype=jnp.float32),
        jax.random.normal(k3, (2, 32, 24, 24), dtype=jnp.float32),
    ]
    targets = [
        jax.random.normal(k4, (2, 4, 16, 16), dtype=jnp.float32),
        jax.random.normal(k5, (2, 8, 8, 8), dtype=jnp.float32),
        jax.random.normal(k6, (2, 32, 24, 24), dtype=jnp.float32),
    ]

    loss = gram_loss(features, targets)
    jax.block_until_ready(loss)

    ref = _gram_loss_ref(features, targets)
    # Slightly relaxed rtol: the (F+T)(F-T)^T identity changes f32 summation
    # order relative to the two-Gram reference.
    assert jnp.allclose(loss, ref, rtol=1e-3, atol=1e-6), (loss, ref)

    print("KERNEL_OK")
</pallas_src>

<mosaic_0001>
module attributes {stable_mosaic.version = 11 : i64} {
  func.func @_gram_mse_kernel(%arg0: i32, %arg1: i32, %arg2: memref<1x32x512xf32, #tpu.memory_space<vmem>>, %arg3: memref<1x32x512xf32, #tpu.memory_space<vmem>>, %arg4: memref<1x1x1xf32, #tpu.memory_space<vmem>>, %arg5: memref<32x32xf32, #tpu.memory_space<vmem>>) attributes {dimension_semantics = [#tpu.dimension_semantics<parallel>, #tpu.dimension_semantics<arbitrary>], iteration_bounds = array<i64: 2, 2>, scalar_prefetch = 0 : i64, scratch_operands = 1 : i64, tpu.core_type = #tpu.core_type<tc>, window_params = [{transform_indices = @transform_0, window_bounds = array<i64: 1, 32, 512>}, {transform_indices = @transform_1, window_bounds = array<i64: 1, 32, 512>}, {transform_indices = @transform_2, window_bounds = array<i64: 1, 1, 1>}]} {
    %c0_i32 = arith.constant 0 : i32
    %0 = arith.cmpi eq, %arg1, %c0_i32 : i32
    %1 = arith.extui %0 : i1 to i32
    %c0_i32_0 = arith.constant 0 : i32
    %2 = arith.cmpi ne, %1, %c0_i32_0 : i32
    scf.if %2 {
      %cst_13 = arith.constant 0.000000e+00 : f32
      %26 = vector.broadcast %cst_13 : f32 to vector<32x32xf32>
      %c0_14 = arith.constant 0 : index
      %c0_15 = arith.constant 0 : index
      %27 = vector.load %arg5[%c0_14, %c0_15] : memref<32x32xf32, #tpu.memory_space<vmem>>, vector<32x32xf32>
      tpu.vector_store %arg5[%c0_14, %c0_15], %26 {strides = array<i32>} : memref<32x32xf32, #tpu.memory_space<vmem>>, vector<32x32xf32>,
    } else {
    }
    %c0 = arith.constant 0 : index
    %c0_1 = arith.constant 0 : index
    %c0_2 = arith.constant 0 : index
    %3 = vector.load %arg2[%c0, %c0_1, %c0_2] : memref<1x32x512xf32, #tpu.memory_space<vmem>>, vector<1x32x512xf32>
    %4 = vector.shape_cast %3 : vector<1x32x512xf32> to vector<32x512xf32>
    %c0_3 = arith.constant 0 : index
    %c0_4 = arith.constant 0 : index
    %c0_5 = arith.constant 0 : index
    %5 = vector.load %arg3[%c0_3, %c0_4, %c0_5] : memref<1x32x512xf32, #tpu.memory_space<vmem>>, vector<1x32x512xf32>
    %6 = vector.shape_cast %5 : vector<1x32x512xf32> to vector<32x512xf32>
    %7 = tpu.iota {dimensions = array<i32: 1>} : vector<32x512xi32>
    %c512_i32 = arith.constant 512 : i32
    %8 = arith.muli %arg1, %c512_i32 : i32
    %9 = vector.broadcast %8 : i32 to vector<32x512xi32>
    %10 = arith.addi %9, %7 : vector<32x512xi32>
    %c576_i32 = arith.constant 576 : i32
    %11 = vector.broadcast %c576_i32 : i32 to vector<32x512xi32>
    %12 = arith.cmpi slt, %10, %11 : vector<32x512xi32>
    %cst = arith.constant 0.000000e+00 : f32
    %13 = vector.broadcast %cst : f32 to vector<32x512xf32>
    %14 = arith.select %12, %4, %13 : vector<32x512xi1>, vector<32x512xf32>
    %cst_6 = arith.constant 0.000000e+00 : f32
    %15 = vector.broadcast %cst_6 : f32 to vector<32x512xf32>
    %16 = arith.select %12, %6, %15 : vector<32x512xi1>, vector<32x512xf32>
    %17 = arith.addf %14, %16 : vector<32x512xf32>
    %18 = arith.subf %14, %16 : vector<32x512xf32>
    %c0_7 = arith.constant 0 : index
    %c0_8 = arith.constant 0 : index
    %19 = vector.load %arg5[%c0_7, %c0_8] : memref<32x32xf32, #tpu.memory_space<vmem>>, vector<32x32xf32>
    %cst_9 = arith.constant dense<0.000000e+00> : vector<32x32xf32>
    %20 = tpu.matmul %17, %18, %cst_9 {dimension_numbers = #tpu.dot_dimension_numbers<[1], [1], [0], [0], [0, 0, 1, 0], [], []>} : vector<32x512xf32>, vector<32x512xf32>, vector<32x32xf32> -> vector<32x32xf32>
    %21 = arith.addf %19, %20 : vector<32x32xf32>
    %c0_10 = arith.constant 0 : index
    %c0_11 = arith.constant 0 : index
    %22 = vector.load %arg5[%c0_10, %c0_11] : memref<32x32xf32, #tpu.memory_space<vmem>>, vector<32x32xf32>
    tpu.vector_store %arg5[%c0_10, %c0_11], %21 {strides = array<i32>} : memref<32x32xf32, #tpu.memory_space<vmem>>, vector<32x32xf32>,
    %c1_i32 = arith.constant 1 : i32
    %23 = arith.cmpi eq, %arg1, %c1_i32 : i32
    %24 = arith.extui %23 : i1 to i32
    %c0_i32_12 = arith.constant 0 : i32
    %25 = arith.cmpi ne, %24, %c0_i32_12 : i32
    scf.if %25 {
      %c0_13 = arith.constant 0 : index
      %c0_14 = arith.constant 0 : index
      %26 = vector.load %arg5[%c0_13, %c0_14] : memref<32x32xf32, #tpu.memory_space<vmem>>, vector<32x32xf32>
      %27 = tpu.transpose %26, [1, 0] : vector<32x32xf32> -> vector<32x32xf32>
      %28 = arith.addf %26, %27 : vector<32x32xf32>
      %cst_15 = arith.constant 8.68055562E-4 : f32
      %29 = vector.broadcast %cst_15 : f32 to vector<32x32xf32>
      %30 = arith.mulf %28, %29 : vector<32x32xf32>
      %31 = arith.mulf %30, %30 : vector<32x32xf32>
      %32 = vector.shape_cast %31 : vector<32x32xf32> to vector<1x32x32xf32>
      %cst_16 = arith.constant dense<0.000000e+00> : vector<1xf32>
      %33 = vector.multi_reduction <add>, %32, %cst_16 [1, 2] : vector<1x32x32xf32> to vector<1xf32>
      %34 = vector.shape_cast %33 : vector<1xf32> to vector<1x1x1xf32>
      %35 = vector.extract %34[0, 0, 0] : f32 from vector<1x1x1xf32>
      %36 = vector.broadcast %35 : f32 to vector<1x1xf32>
      %c0_17 = arith.constant 0 : index
      %c0_18 = arith.constant 0 : index
      %c0_19 = arith.constant 0 : index
      %37 = vector.load %arg4[%c0_17, %c0_18, %c0_19] : memref<1x1x1xf32, #tpu.memory_space<vmem>>, vector<1x1x1xf32>
      %38 = vector.shape_cast %37 : vector<1x1x1xf32> to vector<1x1xf32>
      %39 = vector.shape_cast %36 : vector<1x1xf32> to vector<1x1x1xf32>
      tpu.vector_store %arg4[%c0_17, %c0_18, %c0_19], %39 {strides = array<i32>} : memref<1x1x1xf32, #tpu.memory_space<vmem>>, vector<1x1x1xf32>,
    } else {
    }
    return
  }
  func.func @transform_0(%arg0: i32, %arg1: i32) -> (i32, i32, i32) {
    %c0_i32 = arith.constant 0 : i32
    %c0_i32_0 = arith.constant 0 : i32
    return %arg0, %c0_i32, %arg1 : i32, i32, i32
  }
  func.func @transform_1(%arg0: i32, %arg1: i32) -> (i32, i32, i32) {
    %c0_i32 = arith.constant 0 : i32
    %c0_i32_0 = arith.constant 0 : i32
    return %arg0, %c0_i32, %arg1 : i32, i32, i32
  }
  func.func @transform_2(%arg0: i32, %arg1: i32) -> (i32, i32, i32) {
    %c0_i32 = arith.constant 0 : i32
    %c0_i32_0 = arith.constant 0 : i32
    %c0_i32_1 = arith.constant 0 : i32
    return %arg0, %c0_i32, %c0_i32_0 : i32, i32, i32
  }
}

</mosaic_0001>

<llo_original>
// kernel: tpu_custom_call.1
$region0: #{tpu_custom_call.1}
  #allocation0 [shape = 'u32[]', space=smem, size = 0x4, offset = 0x4, fixed_abs, tag = 'smem constant byte address 0x4 - core index']
  #allocation1 [shape = 'u32[144,128]{1,0:T(1,128)}', space=vmem, size = 0x12000, scoped, tag = 'internal scratch']
  #allocation2 [shape = 'f32[32,32]{1,0:T(8,128)}', space=vmem, size = 0x4000, scoped, tag = 'scratch operand']
  %s0 = inlined_call_operand.hbm [shape: f32[2,32,576], index: 0, kind: input, shape index: {}]
  %s1 = inlined_call_operand.hbm [shape: f32[2,32,576], index: 1, kind: input, shape index: {}]
  %s2 = inlined_call_operand.vmem [shape: f32[2,1,1], index: 2, kind: output, shape index: {}]
  %s3 = sld [smem:[#allocation0]]
  $region57: #{tpu_custom_call.1} parent=0
    _
  %s5 = ssub.s32 1, %s3
  %s6 = scalar_select 0, %s5, %s3
  $region1: #{tpu_custom_call.1} parent=0
    #allocation3 [shape = 'u8[131072]{0}', space=vmem, size = 0x20000, scoped, tag = 'input window, operand 0']
    #allocation4 [shape = 's32[2]{0}', space=sflag, size = 0x8, scoped, tag = 'scoped memory for tpu_custom_call.1']
    #allocation5 [shape = 'u8[131072]{0}', space=vmem, size = 0x20000, scoped, tag = 'input window, operand 1']
    #allocation6 [shape = 's32[2]{0}', space=sflag, size = 0x8, scoped, tag = 'scoped memory for tpu_custom_call.1']
    %7 = vsyncpa [#allocation4], 0
    %s8 = scalar_lea.sflag [#allocation4], 1
    %9 = vsyncpa %s8, 0
    %10 = vsyncpa [#allocation6], 0
    %s11 = scalar_lea.sflag [#allocation6], 1
    %12 = vsyncpa %s11, 0
    loop: start=0, step=1, limit=6
    $region2: #{tpu_custom_call.1} parent=1 // loop_pre_header
      _
    $region3: #{tpu_custom_call.1} parent=1 // loop_header
      %s14 = sphi 0, %s18
      %p15 = scmp.ge.s32.totalorder %s14, 6
      %s21 = sphi 0, %s33
      %s22 = sphi 0, %s29
      %s23 = sphi 0, %s21
      %s24 = sphi 0, %s22
      %s25 = sphi 0, %s23
      %s26 = sphi 0, %s24
      %s38 = sphi 0, %s40
      %s41 = sphi 0, %s38
      %s42 = sphi 0, %s41
      %s58 = sphi 0, %s42
      %s66 = sphi 0, %s68
      %s69 = sphi 0, %s66
      %s70 = sphi 0, %s69
      %s86 = sphi 0, %s70
      %s92 = sphi 0, %s94
      %s95 = sphi 0, %s92
      %s96 = sphi 0, %s95
      %s112 = sphi 0, %s96
    $region4: #{tpu_custom_call.1} parent=1 // loop_header_branch
      %17 = sbr.rel (%p15) target = $region8
    $region5: #{tpu_custom_call.1} parent=1 // loop_body
      %s19 = ssub.s32 %s14, 1
      %s20 = ssub.s32 %s14, 2
      %s27 = sadd.s32 1, %s22
      %p28 = scmp.ge.s32.totalorder %s27, 2
      %s29 = scalar_select %p28, 0, %s27
      %s30 = sadd.s32 1, %s21
      %s31 = scalar_select %p28, %s30, %s21
      %p32 = scmp.ge.s32.totalorder %s31, 2
      %s33 = scalar_select %p32, 0, %s31
      %s34 = ssub.s32 %s21, %s33
      %s35 = ssub.s32 %s22, %s29
      %s36 = sor.u32 %s34, %s35
      %p37 = scmp.eq.s32.totalorder %s36, 0
      %s39 = sadd.s32 %s38, 1
      %s40 = scalar_select %p37, %s38, %s39
      %p43 = pneg %p37
      %p44 = scmp.eq.s32.totalorder %s14, 3
      %p45 = por %p43, %p44
      %p46 = scmp.ne.s32.totalorder %s38, %s41
      %p47 = scmp.eq.s32.totalorder %s14, 0
      %p48 = por %p46, %p47
      %p49 = scmp.ne.s32.totalorder %s38, %s41
      %p50 = scmp.eq.s32.totalorder %s19, 3
      %p51 = por %p49, %p50
      %p52 = scmp.ne.s32.totalorder %s41, %s42
      %p53 = scmp.eq.s32.totalorder %s19, 0
      %p54 = por %p52, %p53
      %p55 = scmp.ne.s32.totalorder %s41, %s42
      %p56 = scmp.eq.s32.totalorder %s20, 3
      %p57 = por %p55, %p56
      %p59 = scmp.ne.s32.totalorder %s42, %s58
      %p60 = scmp.eq.s32.totalorder %s20, 0
      %p61 = por %p59, %p60
      %s62 = ssub.s32 %s21, %s33
      %s63 = ssub.s32 %s22, %s29
      %s64 = sor.u32 %s62, %s63
      %p65 = scmp.eq.s32.totalorder %s64, 0
      %s67 = sadd.s32 %s66, 1
      %s68 = scalar_select %p65, %s66, %s67
      %p71 = pneg %p65
      %p72 = scmp.eq.s32.totalorder %s14, 3
      %p73 = por %p71, %p72
      %p74 = scmp.ne.s32.totalorder %s66, %s69
      %p75 = scmp.eq.s32.totalorder %s14, 0
      %p76 = por %p74, %p75
      %p77 = scmp.ne.s32.totalorder %s66, %s69
      %p78 = scmp.eq.s32.totalorder %s19, 3
      %p79 = por %p77, %p78
      %p80 = scmp.ne.s32.totalorder %s69, %s70
      %p81 = scmp.eq.s32.totalorder %s19, 0
      %p82 = por %p80, %p81
      %p83 = scmp.ne.s32.totalorder %s69, %s70
      %p84 = scmp.eq.s32.totalorder %s20, 3
      %p85 = por %p83, %p84
      %p87 = scmp.ne.s32.totalorder %s70, %s86
      %p88 = scmp.eq.s32.totalorder %s20, 0
      %p89 = por %p87, %p88
      %s90 = ssub.s32 %s21, %s33
      %p91 = scmp.eq.s32.totalorder %s90, 0
      %s93 = sadd.s32 %s92, 1
      %s94 = scalar_select %p91, %s92, %s93
      %p97 = pneg %p91
      %p98 = scmp.eq.s32.totalorder %s14, 3
      %p99 = por %p97, %p98
      %p100 = scmp.ne.s32.totalorder %s92, %s95
      %p101 = scmp.eq.s32.totalorder %s14, 0
      %p102 = por %p100, %p101
      %p103 = scmp.ne.s32.totalorder %s92, %s95
      %p104 = scmp.eq.s32.totalorder %s19, 3
      %p105 = por %p103, %p104
      %p106 = scmp.ne.s32.totalorder %s95, %s96
      %p107 = scmp.eq.s32.totalorder %s19, 0
      %p108 = por %p106, %p107
      %p109 = scmp.ne.s32.totalorder %s95, %s96
      %p110 = scmp.eq.s32.totalorder %s20, 3
      %p111 = por %p109, %p110
      %p113 = scmp.ne.s32.totalorder %s96, %s112
      %p114 = scmp.eq.s32.totalorder %s20, 0
      %p115 = por %p113, %p114
      %p116 = scmp.le.s32.totalorder 1, %s14
      %p117 = scmp.lt.s32.totalorder %s14, 5
      %p118 = pnand %p116, %p117
      %p119 = pneg %p118
      // Predicated region
      $region9: #{tpu_custom_call.1} parent=5 // pred_check
        _
      $region10: #{tpu_custom_call.1} parent=5 // pred_check_branch
        %121 = sbr.rel (%p118) target = $region12
      $region11: #{tpu_custom_call.1} parent=5 // pred_region
        %s122 = ssub.s32 %s14, 1
      $region12: #{tpu_custom_call.1} parent=5 // pred_fallthru
        _
      %p123 = scmp.lt.s32.totalorder %s14, 4
      // Predicated region
      $region13: #{tpu_custom_call.1} parent=5 // pred_check
        %p124 = pneg %p123
      $region14: #{tpu_custom_call.1} parent=5 // pred_check_branch
        %126 = sbr.rel (%p124) target = $region16
      $region15: #{tpu_custom_call.1} parent=5 // pred_region
        // Predicated region
        $region17: #{tpu_custom_call.1} parent=15 // pred_check
          %p127 = pneg %p48
        $region18: #{tpu_custom_call.1} parent=15 // pred_check_branch
          %129 = sbr.rel (%p127) target = $region20
        $region19: #{tpu_custom_call.1} parent=15 // pred_region
          %s130 = sand.u32 %s38, 1
          %s131 = scalar_lea.sflag [#allocation4], %s130
          %s132 = sand.u32 %s38, 1
          %s133 = smul.addr %s132, 128
          %s134 = scalar_lea.vmem [#allocation3], %s133
          %s135 = smul.u32 4, %s22
          %s136 = ssub.s32 5, %s135
          %p137 = scmp.lt.s32.totalorder %s136, 4
          %s138 = scalar_select %p137, %s136, 4
          %s139 = smul.u32 512, %s138
          %s141 = ssub.s32 2048, %s139
          %142 = vsyncadd %s131, %s141
          %p143 = scmp.ne.s32.totalorder 0, %s139
          %s144 = smul.addr %s21, 20
          %s145 = sadd.s32 %s135, %s144
          %s146 = smul.addr %s145, 128
          %s147 = scalar_lea.hbm %s0, %s146
          %s148 = smul.u32 %s138, 8
          %s149 = smul.u32 %s148, 4
          %s150 = sshll.u32 %s134, 4
          %s151 = int_to_ptr.vmem [resolvable:$true] %s150
          %s152 = sshll.u32 %s149, 4
          %156 = dma.hbm_to_vmem [thread:$0]  (%p143), %s147, %s152, %s151, %s131, 640, 512, %s148
        $region20: #{tpu_custom_call.1} parent=15 // pred_fallthru
          _
        // Predicated region
        $region21: #{tpu_custom_call.1} parent=15 // pred_check
          %p157 = pneg %p76
        $region22: #{tpu_custom_call.1} parent=15 // pred_check_branch
          %159 = sbr.rel (%p157) target = $region24
        $region23: #{tpu_custom_call.1} parent=15 // pred_region
          %s160 = sand.u32 %s66, 1
          %s161 = scalar_lea.sflag [#allocation6], %s160
          %s162 = sand.u32 %s66, 1
          %s163 = smul.addr %s162, 128
          %s164 = scalar_lea.vmem [#allocation5], %s163
          %s165 = smul.u32 4, %s22
          %s166 = ssub.s32 5, %s165
          %p167 = scmp.lt.s32.totalorder %s166, 4
          %s168 = scalar_select %p167, %s166, 4
          %s169 = smul.u32 512, %s168
          %s171 = ssub.s32 2048, %s169
          %172 = vsyncadd %s161, %s171
          %p173 = scmp.ne.s32.totalorder 0, %s169
          %s174 = smul.addr %s21, 20
          %s175 = sadd.s32 %s165, %s174
          %s176 = smul.addr %s175, 128
          %s177 = scalar_lea.hbm %s1, %s176
          %s178 = smul.u32 %s168, 8
          %s179 = smul.u32 %s178, 4
          %s180 = sshll.u32 %s164, 4
          %s181 = int_to_ptr.vmem [resolvable:$true] %s180
          %s182 = sshll.u32 %s179, 4
          %186 = dma.hbm_to_vmem [thread:$0]  (%p173), %s177, %s182, %s181, %s161, 640, 512, %s178
        $region24: #{tpu_custom_call.1} parent=15 // pred_fallthru
          _
      $region16: #{tpu_custom_call.1} parent=5 // pred_fallthru
        _
      %p187 = scmp.le.s32.totalorder 1, %s14
      %p188 = scmp.lt.s32.totalorder %s14, 5
      %p189 = pnand %p187, %p188
      %p190 = pneg %p189
      // Predicated region
      $region25: #{tpu_custom_call.1} parent=5 // pred_check
        _
      $region26: #{tpu_custom_call.1} parent=5 // pred_check_branch
        %192 = sbr.rel (%p189) target = $region28
      $region27: #{tpu_custom_call.1} parent=5 // pred_region
        %s193 = ssub.s32 %s14, 1
        %s194 = sand.u32 %s41, 1
        %s195 = scalar_lea.sflag [#allocation4], %s194
        %s196 = sand.u32 %s41, 1
        %s197 = smul.addr %s196, 128
        %s198 = scalar_lea.vmem [#allocation3], %s197
        // Predicated region
        $region29: #{tpu_custom_call.1} parent=27 // pred_check
          %p199 = pneg %p54
        $region30: #{tpu_custom_call.1} parent=27 // pred_check_branch
          %201 = sbr.rel (%p199) target = $region32
        $region31: #{tpu_custom_call.1} parent=27 // pred_region
          %202 = dma.done %s195, 2048
        $region32: #{tpu_custom_call.1} parent=27 // pred_fallthru
          _
        %s203 = sand.u32 %s69, 1
        %s204 = scalar_lea.sflag [#allocation6], %s203
        %s205 = sand.u32 %s69, 1
        %s206 = smul.addr %s205, 128
        %s207 = scalar_lea.vmem [#allocation5], %s206
        // Predicated region
        $region33: #{tpu_custom_call.1} parent=27 // pred_check
          %p208 = pneg %p82
        $region34: #{tpu_custom_call.1} parent=27 // pred_check_branch
          %210 = sbr.rel (%p208) target = $region36
        $region35: #{tpu_custom_call.1} parent=27 // pred_region
          %211 = dma.done %s204, 2048
        $region36: #{tpu_custom_call.1} parent=27 // pred_fallthru
          _
        %s212 = sand.u32 %s41, 1
        %s213 = scalar_lea.sflag [#allocation4], %s212
        %s214 = sand.u32 %s41, 1
        %s215 = smul.addr %s214, 128
        %s216 = scalar_lea.vmem [#allocation3], %s215
        %p217 = pneg %p54
        %p218 = pneg %p51
        %s219 = sand.u32 %s69, 1
        %s220 = scalar_lea.sflag [#allocation6], %s219
        %s221 = sand.u32 %s69, 1
        %s222 = smul.addr %s221, 128
        %s223 = scalar_lea.vmem [#allocation5], %s222
        %p224 = pneg %p82
        %p225 = pneg %p79
        %p226 = pneg %p108
        %p227 = pneg %p105
        %p228 = scmp.lt.s32.totalorder %s23, 1
        %s229 = scalar_select %p228, %s23, 1
        %s230 = scalar_lea.vmem %s2, %s229
        %s231 = smul.u32 4, %s24
        %s232 = ssub.s32 5, %s231
        %p233 = scmp.lt.s32.totalorder %s232, 4
        %s234 = scalar_select %p233, %s232, 4
        %s235 = smul.u32 512, %s234
        %s236 = smul.u32 4, %s24
        %s237 = ssub.s32 5, %s236
        %p238 = scmp.lt.s32.totalorder %s237, 4
        %s239 = scalar_select %p238, %s237, 4
        %s240 = smul.u32 512, %s239
        %p241 = scmp.lt.s32.totalorder %s23, 1
        %s242 = scalar_select %p241, %s23, 1
        %s243 = scalar_lea.vmem %s2, %s242
        %p244 = scmp.eq.s32.totalorder %s24, 0
        // Predicated region
        $region37: #{tpu_custom_call.1} parent=27 // pred_check
          %p245 = pneg %p244
        $region38: #{tpu_custom_call.1} parent=27 // pred_check_branch
          %247 = sbr.rel (%p245) target = $region40
        $region39: #{tpu_custom_call.1} parent=27 // pred_region
          %vm248 = vcmask 261120
          %249 = vst.msk [vmem:[#allocation2] sm:$0xff] %vm248, 0.0
          %250 = vst.msk [vmem:[#allocation2 + $0x8] sm:$0xff] %vm248, 0.0
          %251 = vst.msk [vmem:[#allocation2 + $0x10] sm:$0xff] %vm248, 0.0
          %252 = vst.msk [vmem:[#allocation2 + $0x18] sm:$0xff] %vm248, 0.0
        $region40: #{tpu_custom_call.1} parent=27 // pred_fallthru
          _
        %v253 = vld [vmem:[%s198] sm:$0xff]
        %v254 = vld [vmem:[%s198 + $0x8] sm:$0xff]
        %v255 = vld [vmem:[%s198 + $0x10] sm:$0xff]
        %v256 = vld [vmem:[%s198 + $0x18] sm:$0xff]
        %v257 = vld [vmem:[%s198 + $0x20] sm:$0xff]
        %v258 = vld [vmem:[%s198 + $0x28] sm:$0xff]
        %v259 = vld [vmem:[%s198 + $0x30] sm:$0xff]
        %v260 = vld [vmem:[%s198 + $0x38] sm:$0xff]
        %v261 = vld [vmem:[%s198 + $0x40] sm:$0xff]
        %v262 = vld [vmem:[%s198 + $0x48] sm:$0xff]
        %v263 = vld [vmem:[%s198 + $0x50] sm:$0xff]
        %v264 = vld [vmem:[%s198 + $0x58] sm:$0xff]
        %v265 = vld [vmem:[%s198 + $0x60] sm:$0xff]
        %v266 = vld [vmem:[%s198 + $0x68] sm:$0xff]
        %v267 = vld [vmem:[%s198 + $0x70] sm:$0xff]
        %v268 = vld [vmem:[%s198 + $0x78] sm:$0xff]
        %v269 = vld [vmem:[%s207] sm:$0xff]
        %v270 = vld [vmem:[%s207 + $0x8] sm:$0xff]
        %v271 = vld [vmem:[%s207 + $0x10] sm:$0xff]
        %v272 = vld [vmem:[%s207 + $0x18] sm:$0xff]
        %v273 = vld [vmem:[%s207 + $0x20] sm:$0xff]
        %v274 = vld [vmem:[%s207 + $0x28] sm:$0xff]
        %v275 = vld [vmem:[%s207 + $0x30] sm:$0xff]
        %v276 = vld [vmem:[%s207 + $0x38] sm:$0xff]
        %v277 = vld [vmem:[%s207 + $0x40] sm:$0xff]
        %v278 = vld [vmem:[%s207 + $0x48] sm:$0xff]
        %v279 = vld [vmem:[%s207 + $0x50] sm:$0xff]
        %v280 = vld [vmem:[%s207 + $0x58] sm:$0xff]
        %v281 = vld [vmem:[%s207 + $0x60] sm:$0xff]
        %v282 = vld [vmem:[%s207 + $0x68] sm:$0xff]
        %v283 = vld [vmem:[%s207 + $0x70] sm:$0xff]
        %v284 = vld [vmem:[%s207 + $0x78] sm:$0xff]
        %v285 = vlaneseq
        %v286 = vand.u32 %v285, 127
        %v287 = vadd.s32 %v286, 128
        %v288 = vadd.s32 %v286, 256
        %v289 = vadd.s32 %v286, 384
        %s290 = smul.u32 %s24, 512
        %v291 = vstv %s290
        %v292 = vadd.s32 %v291, %v286
        %v293 = vadd.s32 %v291, %v287
        %v294 = vadd.s32 %v291, %v288
        %v295 = vadd.s32 %v291, %v289
        %vm296 = vcmp.lt.s32.totalorder %v292, 576
        %vm297 = vcmp.lt.s32.totalorder %v293, 576
        %vm298 = vcmp.lt.s32.totalorder %v294, 576
        %vm299 = vcmp.lt.s32.totalorder %v295, 576
        %v300 = vsel %vm296, %v253, 0.0
        %v301 = vsel %vm297, %v254, 0.0
        %v302 = vsel %vm298, %v255, 0.0
        %v303 = vsel %vm299, %v256, 0.0
        %v304 = vsel %vm296, %v257, 0.0
        %v305 = vsel %vm297, %v258, 0.0
        %v306 = vsel %vm298, %v259, 0.0
        %v307 = vsel %vm299, %v260, 0.0
        %v308 = vsel %vm296, %v261, 0.0
        %v309 = vsel %vm297, %v262, 0.0
        %v310 = vsel %vm298, %v263, 0.0
        %v311 = vsel %vm299, %v264, 0.0
        %v312 = vsel %vm296, %v265, 0.0
        %v313 = vsel %vm297, %v266, 0.0
        %v314 = vsel %vm298, %v267, 0.0
        %v315 = vsel %vm299, %v268, 0.0
        %v316 = vsel %vm296, %v269, 0.0
        %v317 = vsel %vm297, %v270, 0.0
        %v318 = vsel %vm298, %v271, 0.0
        %v319 = vsel %vm299, %v272, 0.0
        %v320 = vsel %vm296, %v273, 0.0
        %v321 = vsel %vm297, %v274, 0.0
        %v322 = vsel %vm298, %v275, 0.0
        %v323 = vsel %vm299, %v276, 0.0
        %v324 = vsel %vm296, %v277, 0.0
        %v325 = vsel %vm297, %v278, 0.0
        %v326 = vsel %vm298, %v279, 0.0
        %v327 = vsel %vm299, %v280, 0.0
        %v328 = vsel %vm296, %v281, 0.0
        %v329 = vsel %vm297, %v282, 0.0
        %v330 = vsel %vm298, %v283, 0.0
        %v331 = vsel %vm299, %v284, 0.0
        %v332 = vadd.f32 %v300, %v316
        %v333 = vadd.f32 %v301, %v317
        %v334 = vadd.f32 %v302, %v318
        %v335 = vadd.f32 %v303, %v319
        %v336 = vadd.f32 %v304, %v320
        %v337 = vadd.f32 %v305, %v321
        %v338 = vadd.f32 %v306, %v322
        %v339 = vadd.f32 %v307, %v323
        %v340 = vadd.f32 %v308, %v324
        %v341 = vadd.f32 %v309, %v325
        %v342 = vadd.f32 %v310, %v326
        %v343 = vadd.f32 %v311, %v327
        %v344 = vadd.f32 %v312, %v328
        %v345 = vadd.f32 %v313, %v329
        %v346 = vadd.f32 %v314, %v330
        %v347 = vadd.f32 %v315, %v331
        %v348 = vsub.f32 %v300, %v316
        %v349 = vsub.f32 %v301, %v317
        %v350 = vsub.f32 %v302, %v318
        %v351 = vsub.f32 %v303, %v319
        %v352 = vsub.f32 %v304, %v320
        %v353 = vsub.f32 %v305, %v321
        %v354 = vsub.f32 %v306, %v322
        %v355 = vsub.f32 %v307, %v323
        %v356 = vsub.f32 %v308, %v324
        %v357 = vsub.f32 %v309, %v325
        %v358 = vsub.f32 %v310, %v326
        %v359 = vsub.f32 %v311, %v327
        %v360 = vsub.f32 %v312, %v328
        %v361 = vsub.f32 %v313, %v329
        %v362 = vsub.f32 %v314, %v330
        %v363 = vsub.f32 %v315, %v331
        %v364 = vld [vmem:[#allocation2] sm:$0xff]
        %v365 = vld [vmem:[#allocation2 + $0x8] sm:$0xff]
        %v366 = vld [vmem:[#allocation2 + $0x10] sm:$0xff]
        %v367 = vld [vmem:[#allocation2 + $0x18] sm:$0xff]
        %368 = vmatprep.subr.mxu0 %v349
        %369 = vmatpush1.xpose.msra.mxu0 %v348
        %370 = vmatprep.subr.mxu0 %v353
        %371 = vmatpush1.xpose.msra.mxu0 %v352
        %372 = vmatprep.subr.mxu0 %v357
        %373 = vmatpush1.xpose.msra.mxu0 %v356
        %374 = vmatprep.subr.mxu0 %v361
        %375 = vmatpush1.xpose.msra.mxu0 %v360
        %376 = vmatprep.subr.mxu0 0.0
        %377 = vmatpush1.xpose.msra.mxu0 0.0
        %378 = vmatprep.subr.mxu0 0.0
        %379 = vmatpush1.xpose.msra.mxu0 0.0
        %380 = vmatprep.subr.mxu0 0.0
        %381 = vmatpush1.xpose.msra.mxu0 0.0
        %382 = vmatprep.subr.mxu0 0.0
        %383 = vmatpush1.xpose.msra.mxu0 0.0
        %384 = vmatprep.subr.mxu0 0.0
        %385 = vmatpush1.xpose.msra.mxu0 0.0
        %386 = vmatprep.subr.mxu0 0.0
        %387 = vmatpush1.xpose.msra.mxu0 0.0
        %388 = vmatprep.subr.mxu0 0.0
        %389 = vmatpush1.xpose.msra.mxu0 0.0
        %390 = vmatprep.subr.mxu0 0.0
        %391 = vmatpush1.xpose.msra.mxu0 0.0
        %392 = vmatprep.subr.mxu0 0.0
        %393 = vmatpush1.xpose.msra.mxu0 0.0
        %394 = vmatprep.subr.mxu0 0.0
        %395 = vmatpush1.xpose.msra.mxu0 0.0
        %396 = vmatprep.subr.mxu0 0.0
        %397 = vmatpush1.xpose.msra.mxu0 0.0
        %398 = vmatprep.subr.mxu0 0.0
        %399 = vmatpush1.xpose.msra.mxu0 0.0
        %400 = vmatprep.subr.mxu0 0.0
        %401 = vmatpush1.xpose.msra.mxu0 0.0
        %402 = vmatprep.subr.mxu0 0.0
        %403 = vmatpush1.xpose.msra.mxu0 0.0
        %404 = vmatprep.subr.mxu0 0.0
        %405 = vmatpush1.xpose.msra.mxu0 0.0
        %406 = vmatprep.subr.mxu0 0.0
        %407 = vmatpush1.xpose.msra.mxu0 0.0
        %408 = vmatprep.subr.mxu0 0.0
        %409 = vmatpush1.xpose.msra.mxu0 0.0
        %410 = vmatprep.subr.mxu0 0.0
        %411 = vmatpush1.xpose.msra.mxu0 0.0
        %412 = vmatprep.subr.mxu0 0.0
        %413 = vmatpush1.xpose.msra.mxu0 0.0
        %414 = vmatprep.subr.mxu0 0.0
        %415 = vmatpush1.xpose.msra.mxu0 0.0
        %416 = vmatprep.subr.mxu0 0.0
        %417 = vmatpush1.xpose.msra.mxu0 0.0
        %418 = vmatprep.subr.mxu0 0.0
        %419 = vmatpush1.xpose.msra.mxu0 0.0
        %420 = vmatprep.subr.mxu0 0.0
        %421 = vmatpush1.xpose.msra.mxu0 0.0
        %422 = vmatprep.subr.mxu0 0.0
        %423 = vmatpush1.xpose.msra.mxu0 0.0
        %424 = vmatprep.subr.mxu0 0.0
        %425 = vmatpush1.xpose.msra.mxu0 0.0
        %426 = vmatprep.subr.mxu0 0.0
        %427 = vmatpush1.xpose.msra.mxu0 0.0
        %428 = vmatprep.subr.mxu0 0.0
        %429 = vmatpush1.xpose.msra.mxu0 0.0
        %430 = vmatprep.subr.mxu0 0.0
        %431 = vmatpush1.xpose.msra.mxu0 0.0
        %432 = vmatprep.mubr.f32.mxu0 %v333
        %433 = vmatmul.mubr.f32.gmra.mrb[0].mxu0 %v332
        %v434 = vpop.f32.mrb[0].mxu0
        %v435 = vadd.f32 0.0, %v434
        %v436 = vpop.f32.mrb[0].mxu0
        %437 = vmatprep.mubr.f32.mxu0 %v337
        %438 = vmatmul.mubr.f32.gmra.mrb[0].mxu0 %v336
        %v439 = vpop.f32.mrb[0].mxu0
        %v440 = vadd.f32 0.0, %v439
        %v441 = vpop.f32.mrb[0].mxu0
        %442 = vmatprep.mubr.f32.mxu0 %v341
        %443 = vmatmul.mubr.f32.gmra.mrb[0].mxu0 %v340
        %v444 = vpop.f32.mrb[0].mxu0
        %v445 = vadd.f32 0.0, %v444
        %v446 = vpop.f32.mrb[0].mxu0
        %447 = vmatprep.mubr.f32.mxu0 %v345
        %448 = vmatmul.mubr.f32.gmra.mrb[0].mxu0 %v344
        %v449 = vpop.f32.mrb[0].mxu0
        %v450 = vadd.f32 0.0, %v449
        %v451 = vpop.f32.mrb[0].mxu0
        %452 = vdwg.mxu0
        %453 = vmatprep.subr.mxu0 %v351
        %454 = vmatpush1.xpose.msra.mxu0 %v350
        %455 = vmatprep.subr.mxu0 %v355
        %456 = vmatpush1.xpose.msra.mxu0 %v354
        %457 = vmatprep.subr.mxu0 %v359
        %458 = vmatpush1.xpose.msra.mxu0 %v358
        %459 = vmatprep.subr.mxu0 %v363
        %460 = vmatpush1.xpose.msra.mxu0 %v362
        %461 = vmatprep.subr.mxu0 0.0
        %462 = vmatpush1.xpose.msra.mxu0 0.0
        %463 = vmatprep.subr.mxu0 0.0
        %464 = vmatpush1.xpose.msra.mxu0 0.0
        %465 = vmatprep.subr.mxu0 0.0
        %466 = vmatpush1.xpose.msra.mxu0 0.0
        %467 = vmatprep.subr.mxu0 0.0
        %468 = vmatpush1.xpose.msra.mxu0 0.0
        %469 = vmatprep.subr.mxu0 0.0
        %470 = vmatpush1.xpose.msra.mxu0 0.0
        %471 = vmatprep.subr.mxu0 0.0
        %472 = vmatpush1.xpose.msra.mxu0 0.0
        %473 = vmatprep.subr.mxu0 0.0
        %474 = vmatpush1.xpose.msra.mxu0 0.0
        %475 = vmatprep.subr.mxu0 0.0
        %476 = vmatpush1.xpose.msra.mxu0 0.0
        %477 = vmatprep.subr.mxu0 0.0
        %478 = vmatpush1.xpose.msra.mxu0 0.0
        %479 = vmatprep.subr.mxu0 0.0
        %480 = vmatpush1.xpose.msra.mxu0 0.0
        %481 = vmatprep.subr.mxu0 0.0
        %482 = vmatpush1.xpose.msra.mxu0 0.0
        %483 = vmatprep.subr.mxu0 0.0
        %484 = vmatpush1.xpose.msra.mxu0 0.0
        %485 = vmatprep.subr.mxu0 0.0
        %486 = vmatpush1.xpose.msra.mxu0 0.0
        %487 = vmatprep.subr.mxu0 0.0
        %488 = vmatpush1.xpose.msra.mxu0 0.0
        %489 = vmatprep.subr.mxu0 0.0
        %490 = vmatpush1.xpose.msra.mxu0 0.0
        %491 = vmatprep.subr.mxu0 0.0
        %492 = vmatpush1.xpose.msra.mxu0 0.0
        %493 = vmatprep.subr.mxu0 0.0
        %494 = vmatpush1.xpose.msra.mxu0 0.0
        %495 = vmatprep.subr.mxu0 0.0
        %496 = vmatpush1.xpose.msra.mxu0 0.0
        %497 = vmatprep.subr.mxu0 0.0
        %498 = vmatpush1.xpose.msra.mxu0 0.0
        %499 = vmatprep.subr.mxu0 0.0
        %500 = vmatpush1.xpose.msra.mxu0 0.0
        %501 = vmatprep.subr.mxu0 0.0
        %502 = vmatpush1.xpose.msra.mxu0 0.0
        %503 = vmatprep.subr.mxu0 0.0
        %504 = vmatpush1.xpose.msra.mxu0 0.0
        %505 = vmatprep.subr.mxu0 0.0
        %506 = vmatpush1.xpose.msra.mxu0 0.0
        %507 = vmatprep.subr.mxu0 0.0
        %508 = vmatpush1.xpose.msra.mxu0 0.0
        %509 = vmatprep.subr.mxu0 0.0
        %510 = vmatpush1.xpose.msra.mxu0 0.0
        %511 = vmatprep.subr.mxu0 0.0
        %512 = vmatpush1.xpose.msra.mxu0 0.0
        %513 = vmatprep.subr.mxu0 0.0
        %514 = vmatpush1.xpose.msra.mxu0 0.0
        %515 = vmatprep.subr.mxu0 0.0
        %516 = vmatpush1.xpose.msra.mxu0 0.0
        %517 = vmatprep.mubr.f32.mxu0 %v335
        %518 = vmatmul.mubr.f32.gmra.mrb[0].mxu0 %v334
        %v519 = vpop.f32.mrb[0].mxu0
        %v520 = vadd.f32 %v435, %v519
        %v521 = vpop.f32.mrb[0].mxu0
        %522 = vmatprep.mubr.f32.mxu0 %v339
        %523 = vmatmul.mubr.f32.gmra.mrb[0].mxu0 %v338
        %v524 = vpop.f32.mrb[0].mxu0
        %v525 = vadd.f32 %v440, %v524
        %v526 = vpop.f32.mrb[0].mxu0
        %527 = vmatprep.mubr.f32.mxu0 %v343
        %528 = vmatmul.mubr.f32.gmra.mrb[0].mxu0 %v342
        %v529 = vpop.f32.mrb[0].mxu0
        %v530 = vadd.f32 %v445, %v529
        %v531 = vpop.f32.mrb[0].mxu0
        %532 = vmatprep.mubr.f32.mxu0 %v347
        %533 = vmatmul.mubr.f32.gmra.mrb[0].mxu0 %v346
        %v534 = vpop.f32.mrb[0].mxu0
        %v535 = vadd.f32 %v450, %v534
        %v536 = vpop.f32.mrb[0].mxu0
        %537 = vdwg.mxu0
        %v538 = vadd.f32 %v364, %v520
        %v539 = vadd.f32 %v365, %v525
        %v540 = vadd.f32 %v366, %v530
        %v541 = vadd.f32 %v367, %v535
        %vm542 = vcmask 261120
        %543 = vst.msk [vmem:[#allocation2] sm:$0xff] %vm542, %v538
        %544 = vst.msk [vmem:[#allocation2 + $0x8] sm:$0xff] %vm542, %v539
        %545 = vst.msk [vmem:[#allocation2 + $0x10] sm:$0xff] %vm542, %v540
        %546 = vst.msk [vmem:[#allocation2 + $0x18] sm:$0xff] %vm542, %v541
        %p547 = scmp.eq.s32.totalorder %s24, 1
        // Predicated region
        $region41: #{tpu_custom_call.1} parent=27 // pred_check
          %p548 = pneg %p547
        $region42: #{tpu_custom_call.1} parent=27 // pred_check_branch
          %550 = sbr.rel (%p548) target = $region44
        $region43: #{tpu_custom_call.1} parent=27 // pred_region
          %v551 = vld [vmem:[#allocation2] sm:$0xff]
          %v552 = vld [vmem:[#allocation2 + $0x8] sm:$0xff]
          %v553 = vld [vmem:[#allocation2 + $0x10] sm:$0xff]
          %v554 = vld [vmem:[#allocation2 + $0x18] sm:$0xff]
          %555 = vxpose.xlu0.b32.start [1/16] %v551, 128
          %556 = vxpose.xlu0.b32.cont [2/16] %v552, 128
          %557 = vxpose.xlu0.b32.cont [3/16] %v553, 128
          %558 = vxpose.xlu0.b32.cont [4/16] %v554, 128
          %559 = vxpose.xlu0.b32.cont [5/16] 0.0, 128
          %560 = vxpose.xlu0.b32.cont [6/16] 0.0, 128
          %561 = vxpose.xlu0.b32.cont [7/16] 0.0, 128
          %562 = vxpose.xlu0.b32.cont [8/16] 0.0, 128
          %563 = vxpose.xlu0.b32.cont [9/16] 0.0, 128
          %564 = vxpose.xlu0.b32.cont [10/16] 0.0, 128
          %565 = vxpose.xlu0.b32.cont [11/16] 0.0, 128
          %566 = vxpose.xlu0.b32.cont [12/16] 0.0, 128
          %567 = vxpose.xlu0.b32.cont [13/16] 0.0, 128
          %568 = vxpose.xlu0.b32.cont [14/16] 0.0, 128
          %569 = vxpose.xlu0.b32.cont [15/16] 0.0, 128
          %570 = vxpose.xlu0.b32.end [16/16] 0.0, 128
          %v571 = vpop.trf.xlu0
          %v572 = vpop.trf.xlu0
          %v573 = vpop.trf.xlu0
          %v574 = vpop.trf.xlu0
          %v575 = vpop.trf.xlu0
          %v576 = vpop.trf.xlu0
          %v577 = vpop.trf.xlu0
          %v578 = vpop.trf.xlu0
          %v579 = vpop.trf.xlu0
          %v580 = vpop.trf.xlu0
          %v581 = vpop.trf.xlu0
          %v582 = vpop.trf.xlu0
          %v583 = vpop.trf.xlu0
          %v584 = vpop.trf.xlu0
          %v585 = vpop.trf.xlu0
          %v586 = vpop.trf.xlu0
          %v587 = vadd.f32 %v551, %v571
          %v588 = vadd.f32 %v552, %v572
          %v589 = vadd.f32 %v553, %v573
          %v590 = vadd.f32 %v554, %v574
          %v591 = vmul.f32 %v587, 0.00086805556
          %v592 = vmul.f32 %v588, 0.00086805556
          %v593 = vmul.f32 %v589, 0.00086805556
          %v594 = vmul.f32 %v590, 0.00086805556
          %v595 = vmul.f32 %v591, %v591
          %v596 = vmul.f32 %v592, %v592
          %v597 = vmul.f32 %v593, %v593
          %v598 = vmul.f32 %v594, %v594
          %v599 = vsel %vm542, %v595, 0.0
          %v600 = vsel %vm542, %v596, 0.0
          %v601 = vadd.f32 %v599, %v600
          %v602 = vsel %vm542, %v597, 0.0
          %v603 = vadd.f32 %v601, %v602
          %v604 = vsel %vm542, %v598, 0.0
          %v605 = vadd.f32 %v603, %v604
          %606 = vadd.xlane.f32.xlu0 %v605
          %v607 = vpop.xlane.xlu0 %606
          %v608 = vrot.slane %v607, 4
          %v609 = vadd.f32 %v607, %v608
          %v610 = vrot.slane %v609, 2
          %v611 = vadd.f32 %v609, %v610
          %v612 = vrot.slane %v611, 1
          %v613 = vadd.f32 %v611, %v612
          %s614 = vtos %v613
          %v615 = vstv %s614
          %vm616 = vcmask 0
          %617 = vst.msk [vmem:[%s243] sm:$0x1] %vm616, %v615
        $region44: #{tpu_custom_call.1} parent=27 // pred_fallthru
          _
        %p618 = scmp.lt.s32.totalorder %s23, 1
        %s619 = scalar_select %p618, %s23, 1
        %s620 = scalar_lea.vmem %s2, %s619
        // Predicated region
        $region45: #{tpu_custom_call.1} parent=27 // pred_check
          %p621 = pneg %p105
        $region46: #{tpu_custom_call.1} parent=27 // pred_check_branch
          %623 = sbr.rel (%p621) target = $region48
        $region47: #{tpu_custom_call.1} parent=27 // pred_region
          _
        $region48: #{tpu_custom_call.1} parent=27 // pred_fallthru
          _
      $region28: #{tpu_custom_call.1} parent=5 // pred_fallthru
        _
      %p624 = scmp.le.s32.totalorder 2, %s14
      // Predicated region
      $region49: #{tpu_custom_call.1} parent=5 // pred_check
        %p625 = pneg %p624
      $region50: #{tpu_custom_call.1} parent=5 // pred_check_branch
        %627 = sbr.rel (%p625) target = $region52
      $region51: #{tpu_custom_call.1} parent=5 // pred_region
        %s628 = ssub.s32 %s14, 2
        // Predicated region
        $region53: #{tpu_custom_call.1} parent=51 // pred_check
          %p629 = pneg %p111
        $region54: #{tpu_custom_call.1} parent=51 // pred_check_branch
          %631 = sbr.rel (%p629) target = $region56
        $region55: #{tpu_custom_call.1} parent=51 // pred_region
          %p632 = scmp.lt.s32.totalorder %s25, 1
          %s633 = scalar_select %p632, %s25, 1
          %s634 = scalar_lea.vmem %s2, %s633
        $region56: #{tpu_custom_call.1} parent=51 // pred_fallthru
          _
      $region52: #{tpu_custom_call.1} parent=5 // pred_fallthru
        _
    $region6: #{tpu_custom_call.1} parent=1 // loop_footer
      %s18 = sadd.s32 1, %s14
    $region7: #{tpu_custom_call.1} parent=1 // loop_footer_branch
      %13 = sbr.rel target = $region3
    $region8: #{tpu_custom_call.1} parent=1 // loop_exit
      _
    %635 = vsyncpa [#allocation4], 1
    %s636 = scalar_lea.sflag [#allocation4], 1
    %637 = vsyncpa %s636, 1
    %638 = vsyncpa [#allocation6], 1
    %s639 = scalar_lea.sflag [#allocation6], 1
    %640 = vsyncpa %s639, 1

</llo_original>
